<compile_context>
chip_gen: v5e
topology: v5e:2x2
jax: 0.10.0
libtpu: 0.0.40
codegen_flags: <defaults>
</compile_context>

<pallas_src>
import functools

import jax
import jax.numpy as jnp
from jax.experimental import pallas as pl
from jax.experimental.pallas import tpu as pltpu


def _harloss_kernel(*refs, true_b, tile_b, use_matmul, mask_rows, unbiased_std):
    """Processes one (TB, C) batch tile; emits per-tile partial sums."""
    if use_matmul:
        y_ref, b_ref, tri_ref, std_ref, wass_ref = refs
    else:
        y_ref, b_ref, std_ref, wass_ref = refs
        tri_ref = None

    i = pl.program_id(0)
    c = y_ref.shape[-1]
    inv_c = jnp.float32(1.0 / c)

    y = y_ref[...].astype(jnp.float32)
    b = b_ref[...].astype(jnp.float32)

    if mask_rows:
        # Only emitted when the last tile is partial.  Zeroed logits softmax
        # to a uniform row, so std_diff == 0 and p - q == 0 for padded rows;
        # they contribute exactly 0 to both partial sums (no extra masking).
        row = jax.lax.broadcasted_iota(jnp.int32, (tile_b, 1), 0) + i * tile_b
        valid = row < true_b
        y = jnp.where(valid, y, 0.0)
        b = jnp.where(valid, b, 0.0)

    def _softmax(x):
        m = jnp.max(x, axis=-1, keepdims=True)
        e = jnp.exp(x - m)
        s = jnp.sum(e, axis=-1, keepdims=True)
        # approx=True (raw EUP vrcp) is too coarse for the 1e-5 dive_std check.
        return e * pl.reciprocal(s, approx=False)

    p = _softmax(y)
    q = _softmax(b)

    def _row_std(x):
        # One-pass population std: sqrt(E[x^2] - E[x]^2); 1/C folded into a
        # constant multiply.  Both cross-lane sums issue on the XLU.
        ex = jnp.sum(x, axis=-1, keepdims=True) * inv_c
        ex2 = jnp.sum(x * x, axis=-1, keepdims=True) * inv_c
        var = jnp.maximum(ex2 - ex * ex, 0.0)
        if unbiased_std and c > 1:
            var = var * jnp.float32(c / (c - 1))
        return jnp.sqrt(var)

    std_diff = jnp.abs(_row_std(p) - _row_std(q))          # (TB, 1)

    # Wasserstein over ordered class bins.  cumsum is linear, so
    # cumsum(p) - cumsum(q) == cumsum(p - q).
    d = p - q
    if use_matmul:
        # Small C: single MXU matmul against the resident (C, C) tri constant.
        cdf = jnp.dot(d, tri_ref[...], preferred_element_type=jnp.float32)
    else:
        # Large C: Hillis-Steele inclusive prefix sum, log2(C) roll+add steps
        # on XLU/VPU slots; no (C, C) matrix, no MXU work.
        col = jax.lax.broadcasted_iota(jnp.int32, d.shape, 1)
        cdf = d
        shift = 1
        while shift < c:
            rolled = pltpu.roll(cdf, shift=shift, axis=1)
            cdf = cdf + jnp.where(col >= shift, rolled, 0.0)
            shift *= 2
    wass_row = jnp.sum(jnp.abs(cdf), axis=-1, keepdims=True)     # (TB, 1)

    part_std = jnp.sum(std_diff, axis=0, keepdims=True)          # (1, 1)
    part_wass = jnp.sum(wass_row, axis=0, keepdims=True)         # (1, 1)

    # Per-step distinct (8, 128) aligned block (plain unmasked vst; grid axis
    # stays "parallel").  Only element [0, 0] is nonzero, so the wrapper's
    # full-array jnp.sum is exact (adds zeros) and needs no strided gather.
    srow = jax.lax.broadcasted_iota(jnp.int32, (8, 128), 0)
    scol = jax.lax.broadcasted_iota(jnp.int32, (8, 128), 1)
    at_origin = (srow == 0) & (scol == 0)
    std_ref[...] = jnp.where(at_origin, part_std, 0.0)
    wass_ref[...] = jnp.where(at_origin, part_wass, 0.0)


def _vmem_capacity_bytes():
    try:
        return int(pltpu.get_tpu_info().vmem_capacity_bytes)
    except Exception:
        return 64 * 1024 * 1024   # conservative fallback (v7x-sized)


def har_loss(y_pred, b_pred, *, cdf_impl="auto", block_rows=None,
             unbiased_std=False, target_block_bytes=4 << 20):
    assert y_pred.shape == b_pred.shape and y_pred.ndim == 2
    B, C = y_pred.shape
    itemsize = jnp.dtype(y_pred.dtype).itemsize
    # Sublane multiple for the input dtype (8 for f32, 16 for bf16, 32 for i8).
    sub = max(8, 32 // itemsize)

    if cdf_impl == "auto":
        # Above ~256 classes the f32 C^2 matmul starts to bind the MXU
        # (earliest on v5e); the roll-based prefix sum keeps the kernel
        # HBM-bound on all generations.
        use_matmul = C <= 256
    elif cdf_impl == "matmul":
        use_matmul = True
    elif cdf_impl == "scan":
        use_matmul = False
    else:
        raise ValueError(f"unknown cdf_impl: {cdf_impl}")

    vmem_cap = _vmem_capacity_bytes()
    vmem_budget = (vmem_cap * 3) // 4      # ~48 MiB on v7x, ~96 MiB on v5e/v6e

    # Per-row VMEM cost: 2 inputs x 2 pipeline buffers in native dtype plus
    # ~6 live f32 row-intermediates (p, q, d/cdf and temporaries).
    per_row = 4 * C * itemsize + 6 * C * 4
    fixed = (2 * C * C * 4) if use_matmul else 0    # resident (C,C) tri input
    avail = max(vmem_budget - fixed, per_row * sub)
    tb_vmem = avail // per_row
    # Aim for ~4 MiB per input block so the ~0.35 us per-step overhead
    # amortizes for small C.
    tb_bw = max(sub, target_block_bytes // (C * itemsize))

    if block_rows is not None:
        tb = int(block_rows)
    else:
        tb = min(tb_vmem, tb_bw)
    if tb >= B:
        tb = B
    else:
        tb = max(sub, (tb // sub) * sub)
    num_tiles = -(-B // tb)

    # VMEM limit derived from the actual footprint (not hard-coded).
    out_bytes = 2 * 2 * 8 * 128 * 4
    est = fixed + per_row * tb + out_bytes
    vmem_limit = int(max(16 << 20, min(vmem_budget, est + est // 4 + (2 << 20))))

    kernel = functools.partial(
        _harloss_kernel, true_b=B, tile_b=tb, use_matmul=use_matmul,
        mask_rows=(B % tb != 0), unbiased_std=unbiased_std)

    in_specs = [
        pl.BlockSpec((tb, C), lambda i: (i, 0)),
        pl.BlockSpec((tb, C), lambda i: (i, 0)),
    ]
    args = [y_pred, b_pred]      # native dtype; cast to f32 inside the kernel
    if use_matmul:
        # Constant upper-triangular ones, built once in the wrapper.  Its block
        # index never changes, so Pallas DMAs it from HBM once and keeps it
        # resident across all grid steps (no per-step regeneration).
        tri = (jnp.arange(C)[:, None] <= jnp.arange(C)[None, :]).astype(jnp.float32)
        in_specs.append(pl.BlockSpec((C, C), lambda i: (0, 0)))
        args.append(tri)

    std_part, wass_part = pl.pallas_call(
        kernel,
        out_shape=(
            jax.ShapeDtypeStruct((num_tiles * 8, 128), jnp.float32),
            jax.ShapeDtypeStruct((num_tiles * 8, 128), jnp.float32),
        ),
        grid=(num_tiles,),
        in_specs=in_specs,
        out_specs=(
            pl.BlockSpec((8, 128), lambda i: (i, 0)),
            pl.BlockSpec((8, 128), lambda i: (i, 0)),
        ),
        compiler_params=pltpu.CompilerParams(
            dimension_semantics=("parallel",),
            vmem_limit_bytes=vmem_limit,
        ),
    )(*args)

    # Only [0,0] of each per-tile block is nonzero -> plain sums are exact.
    inv_b = jnp.float32(1.0 / B)
    dive_std = jnp.sum(std_part) * inv_b
    dive_wass = jnp.sum(wass_part) * inv_b
    return dive_std, dive_wass


def _har_loss_ref(y_pred, b_pred):
    p = jax.nn.softmax(y_pred.astype(jnp.float32), axis=-1)
    q = jax.nn.softmax(b_pred.astype(jnp.float32), axis=-1)
    dive_std = jnp.mean(jnp.abs(jnp.std(p, axis=-1) - jnp.std(q, axis=-1)))
    dive_wass = jnp.mean(
        jnp.sum(jnp.abs(jnp.cumsum(p, axis=-1) - jnp.cumsum(q, axis=-1)), axis=-1)
    )
    return dive_std, dive_wass


if __name__ == "__main__":
    key = jax.random.PRNGKey(0)
    k1, k2 = jax.random.split(key)

    # Small, tile-friendly shapes: (batch, classes).
    B, C = 40, 128
    y_pred = jax.random.normal(k1, (B, C), dtype=jnp.float32)
    b_pred = jax.random.normal(k2, (B, C), dtype=jnp.float32)

    ref_std, ref_wass = _har_loss_ref(y_pred, b_pred)

    # 1) Multi-tile MXU path with a masked partial last tile (40 = 2*16 + 8).
    run_mm = jax.jit(functools.partial(har_loss, cdf_impl="matmul", block_rows=16))
    s1, w1 = run_mm(y_pred, b_pred)
    jax.block_until_ready((s1, w1))
    assert jnp.allclose(s1, ref_std, atol=1e-5), (s1, ref_std)
    assert jnp.allclose(w1, ref_wass, atol=1e-4), (w1, ref_wass)

    # 2) Auto policy (small C -> matmul, single tile since B fits one block).
    s2, w2 = jax.jit(har_loss)(y_pred, b_pred)
    jax.block_until_ready((s2, w2))
    assert jnp.allclose(s2, ref_std, atol=1e-5), (s2, ref_std)
    assert jnp.allclose(w2, ref_wass, atol=1e-4), (w2, ref_wass)

    # 3) Roll-based prefix-sum path (used automatically for C > 256), forced
    #    here at C=128 and multi-tile to validate it numerically.
    run_scan = jax.jit(functools.partial(har_loss, cdf_impl="scan", block_rows=16))
    s3, w3 = run_scan(y_pred, b_pred)
    jax.block_until_ready((s3, w3))
    assert jnp.allclose(s3, ref_std, atol=1e-5), (s3, ref_std)
    assert jnp.allclose(w3, ref_wass, atol=1e-4), (w3, ref_wass)

    print("KERNEL_OK")
</pallas_src>

<mosaic_0001>
module attributes {stable_mosaic.version = 11 : i64} {
  func.func @_harloss_kernel(%arg0: i32, %arg1: memref<16x128xf32, #tpu.memory_space<vmem>>, %arg2: memref<16x128xf32, #tpu.memory_space<vmem>>, %arg3: memref<128x128xf32, #tpu.memory_space<vmem>>, %arg4: memref<8x128xf32, #tpu.memory_space<vmem>>, %arg5: memref<8x128xf32, #tpu.memory_space<vmem>>) attributes {dimension_semantics = [#tpu.dimension_semantics<parallel>], iteration_bounds = array<i64: 3>, scalar_prefetch = 0 : i64, scratch_operands = 0 : i64, tpu.core_type = #tpu.core_type<tc>, window_params = [{transform_indices = @transform_0, window_bounds = array<i64: 16, 128>}, {transform_indices = @transform_1, window_bounds = array<i64: 16, 128>}, {pipeline_mode = #tpu.pipeline_mode<synchronous>, transform_indices = @transform_2, window_bounds = array<i64: 128, 128>}, {transform_indices = @transform_3, window_bounds = array<i64: 8, 128>}, {transform_indices = @transform_4, window_bounds = array<i64: 8, 128>}]} {
    %c0 = arith.constant 0 : index
    %c0_0 = arith.constant 0 : index
    %0 = vector.load %arg1[%c0, %c0_0] : memref<16x128xf32, #tpu.memory_space<vmem>>, vector<16x128xf32>
    %c0_1 = arith.constant 0 : index
    %c0_2 = arith.constant 0 : index
    %1 = vector.load %arg2[%c0_1, %c0_2] : memref<16x128xf32, #tpu.memory_space<vmem>>, vector<16x128xf32>
    %2 = tpu.iota {dimensions = array<i32: 0>} : vector<16x1xi32>
    %c16_i32 = arith.constant 16 : i32
    %3 = arith.muli %arg0, %c16_i32 : i32
    %4 = vector.broadcast %3 : i32 to vector<16x1xi32>
    %5 = arith.addi %2, %4 : vector<16x1xi32>
    %c40_i32 = arith.constant 40 : i32
    %6 = vector.broadcast %c40_i32 : i32 to vector<16x1xi32>
    %7 = arith.cmpi slt, %5, %6 : vector<16x1xi32>
    %cst = arith.constant 0.000000e+00 : f32
    %8 = vector.shape_cast %7 : vector<16x1xi1> to vector<16x1xi1>
    %9 = vector.broadcast %8 : vector<16x1xi1> to vector<16x128xi1>
    %10 = vector.broadcast %cst : f32 to vector<16x128xf32>
    %11 = arith.select %9, %0, %10 : vector<16x128xi1>, vector<16x128xf32>
    %cst_3 = arith.constant 0.000000e+00 : f32
    %12 = vector.shape_cast %7 : vector<16x1xi1> to vector<16x1xi1>
    %13 = vector.broadcast %12 : vector<16x1xi1> to vector<16x128xi1>
    %14 = vector.broadcast %cst_3 : f32 to vector<16x128xf32>
    %15 = arith.select %13, %1, %14 : vector<16x128xi1>, vector<16x128xf32>
    %cst_4 = arith.constant dense<0xFF800000> : vector<16xf32>
    %16 = vector.multi_reduction <maximumf>, %11, %cst_4 [1] : vector<16x128xf32> to vector<16xf32>
    %17 = vector.shape_cast %16 : vector<16xf32> to vector<16x1xf32>
    %18 = vector.broadcast %17 : vector<16x1xf32> to vector<16x128xf32>
    %19 = arith.subf %11, %18 : vector<16x128xf32>
    %20 = math.exp %19 : vector<16x128xf32>
    %cst_5 = arith.constant dense<0.000000e+00> : vector<16xf32>
    %21 = vector.multi_reduction <add>, %20, %cst_5 [1] : vector<16x128xf32> to vector<16xf32>
    %22 = vector.shape_cast %21 : vector<16xf32> to vector<16x1xf32>
    %23 = tpu.reciprocal %22 : vector<16x1xf32> -> vector<16x1xf32>
    %24 = vector.broadcast %23 : vector<16x1xf32> to vector<16x128xf32>
    %25 = arith.mulf %20, %24 : vector<16x128xf32>
    %cst_6 = arith.constant dense<0xFF800000> : vector<16xf32>
    %26 = vector.multi_reduction <maximumf>, %15, %cst_6 [1] : vector<16x128xf32> to vector<16xf32>
    %27 = vector.shape_cast %26 : vector<16xf32> to vector<16x1xf32>
    %28 = vector.broadcast %27 : vector<16x1xf32> to vector<16x128xf32>
    %29 = arith.subf %15, %28 : vector<16x128xf32>
    %30 = math.exp %29 : vector<16x128xf32>
    %cst_7 = arith.constant dense<0.000000e+00> : vector<16xf32>
    %31 = vector.multi_reduction <add>, %30, %cst_7 [1] : vector<16x128xf32> to vector<16xf32>
    %32 = vector.shape_cast %31 : vector<16xf32> to vector<16x1xf32>
    %33 = tpu.reciprocal %32 : vector<16x1xf32> -> vector<16x1xf32>
    %34 = vector.broadcast %33 : vector<16x1xf32> to vector<16x128xf32>
    %35 = arith.mulf %30, %34 : vector<16x128xf32>
    %cst_8 = arith.constant dense<0.000000e+00> : vector<16xf32>
    %36 = vector.multi_reduction <add>, %25, %cst_8 [1] : vector<16x128xf32> to vector<16xf32>
    %37 = vector.shape_cast %36 : vector<16xf32> to vector<16x1xf32>
    %cst_9 = arith.constant 7.812500e-03 : f32
    %38 = vector.broadcast %cst_9 : f32 to vector<16x1xf32>
    %39 = arith.mulf %37, %38 : vector<16x1xf32>
    %40 = arith.mulf %25, %25 : vector<16x128xf32>
    %cst_10 = arith.constant dense<0.000000e+00> : vector<16xf32>
    %41 = vector.multi_reduction <add>, %40, %cst_10 [1] : vector<16x128xf32> to vector<16xf32>
    %42 = vector.shape_cast %41 : vector<16xf32> to vector<16x1xf32>
    %cst_11 = arith.constant 7.812500e-03 : f32
    %43 = vector.broadcast %cst_11 : f32 to vector<16x1xf32>
    %44 = arith.mulf %42, %43 : vector<16x1xf32>
    %45 = arith.mulf %39, %39 : vector<16x1xf32>
    %46 = arith.subf %44, %45 : vector<16x1xf32>
    %cst_12 = arith.constant 0.000000e+00 : f32
    %47 = vector.broadcast %cst_12 : f32 to vector<16x1xf32>
    %48 = arith.maximumf %46, %47 : vector<16x1xf32>
    %49 = math.sqrt %48 : vector<16x1xf32>
    %cst_13 = arith.constant dense<0.000000e+00> : vector<16xf32>
    %50 = vector.multi_reduction <add>, %35, %cst_13 [1] : vector<16x128xf32> to vector<16xf32>
    %51 = vector.shape_cast %50 : vector<16xf32> to vector<16x1xf32>
    %cst_14 = arith.constant 7.812500e-03 : f32
    %52 = vector.broadcast %cst_14 : f32 to vector<16x1xf32>
    %53 = arith.mulf %51, %52 : vector<16x1xf32>
    %54 = arith.mulf %35, %35 : vector<16x128xf32>
    %cst_15 = arith.constant dense<0.000000e+00> : vector<16xf32>
    %55 = vector.multi_reduction <add>, %54, %cst_15 [1] : vector<16x128xf32> to vector<16xf32>
    %56 = vector.shape_cast %55 : vector<16xf32> to vector<16x1xf32>
    %cst_16 = arith.constant 7.812500e-03 : f32
    %57 = vector.broadcast %cst_16 : f32 to vector<16x1xf32>
    %58 = arith.mulf %56, %57 : vector<16x1xf32>
    %59 = arith.mulf %53, %53 : vector<16x1xf32>
    %60 = arith.subf %58, %59 : vector<16x1xf32>
    %cst_17 = arith.constant 0.000000e+00 : f32
    %61 = vector.broadcast %cst_17 : f32 to vector<16x1xf32>
    %62 = arith.maximumf %60, %61 : vector<16x1xf32>
    %63 = math.sqrt %62 : vector<16x1xf32>
    %64 = arith.subf %49, %63 : vector<16x1xf32>
    %65 = math.absf %64 : vector<16x1xf32>
    %66 = arith.subf %25, %35 : vector<16x128xf32>
    %c0_18 = arith.constant 0 : index
    %c0_19 = arith.constant 0 : index
    %67 = vector.load %arg3[%c0_18, %c0_19] : memref<128x128xf32, #tpu.memory_space<vmem>>, vector<128x128xf32>
    %cst_20 = arith.constant dense<0.000000e+00> : vector<16x128xf32>
    %68 = tpu.matmul %66, %67, %cst_20 {dimension_numbers = #tpu.dot_dimension_numbers<[1], [0], [0], [1], [0, 0, 1, 1], [], []>} : vector<16x128xf32>, vector<128x128xf32>, vector<16x128xf32> -> vector<16x128xf32>
    %69 = math.absf %68 : vector<16x128xf32>
    %cst_21 = arith.constant dense<0.000000e+00> : vector<16xf32>
    %70 = vector.multi_reduction <add>, %69, %cst_21 [1] : vector<16x128xf32> to vector<16xf32>
    %71 = vector.shape_cast %70 : vector<16xf32> to vector<16x1xf32>
    %cst_22 = arith.constant dense<0.000000e+00> : vector<1xf32>
    %72 = vector.multi_reduction <add>, %65, %cst_22 [0] : vector<16x1xf32> to vector<1xf32>
    %73 = vector.shape_cast %72 : vector<1xf32> to vector<1x1xf32>
    %cst_23 = arith.constant dense<0.000000e+00> : vector<1xf32>
    %74 = vector.multi_reduction <add>, %71, %cst_23 [0] : vector<16x1xf32> to vector<1xf32>
    %75 = vector.shape_cast %74 : vector<1xf32> to vector<1x1xf32>
    %76 = tpu.iota {dimensions = array<i32: 0>} : vector<8x128xi32>
    %77 = tpu.iota {dimensions = array<i32: 1>} : vector<8x128xi32>
    %c0_i32 = arith.constant 0 : i32
    %78 = vector.broadcast %c0_i32 : i32 to vector<8x128xi32>
    %79 = arith.cmpi eq, %76, %78 : vector<8x128xi32>
    %c0_i32_24 = arith.constant 0 : i32
    %80 = vector.broadcast %c0_i32_24 : i32 to vector<8x128xi32>
    %81 = arith.cmpi eq, %77, %80 : vector<8x128xi32>
    %82 = arith.andi %79, %81 : vector<8x128xi1>
    %cst_25 = arith.constant 0.000000e+00 : f32
    %83 = vector.shape_cast %73 : vector<1x1xf32> to vector<1x1xf32>
    %84 = vector.broadcast %83 : vector<1x1xf32> to vector<8x128xf32>
    %85 = vector.broadcast %cst_25 : f32 to vector<8x128xf32>
    %86 = arith.select %82, %84, %85 : vector<8x128xi1>, vector<8x128xf32>
    %c0_26 = arith.constant 0 : index
    %c0_27 = arith.constant 0 : index
    %87 = vector.load %arg4[%c0_26, %c0_27] : memref<8x128xf32, #tpu.memory_space<vmem>>, vector<8x128xf32>
    tpu.vector_store %arg4[%c0_26, %c0_27], %86 {strides = array<i32>} : memref<8x128xf32, #tpu.memory_space<vmem>>, vector<8x128xf32>,
    %cst_28 = arith.constant 0.000000e+00 : f32
    %88 = vector.shape_cast %75 : vector<1x1xf32> to vector<1x1xf32>
    %89 = vector.broadcast %88 : vector<1x1xf32> to vector<8x128xf32>
    %90 = vector.broadcast %cst_28 : f32 to vector<8x128xf32>
    %91 = arith.select %82, %89, %90 : vector<8x128xi1>, vector<8x128xf32>
    %c0_29 = arith.constant 0 : index
    %c0_30 = arith.constant 0 : index
    %92 = vector.load %arg5[%c0_29, %c0_30] : memref<8x128xf32, #tpu.memory_space<vmem>>, vector<8x128xf32>
    tpu.vector_store %arg5[%c0_29, %c0_30], %91 {strides = array<i32>} : memref<8x128xf32, #tpu.memory_space<vmem>>, vector<8x128xf32>,
    return
  }
  func.func @transform_0(%arg0: i32) -> (i32, i32) {
    %c0_i32 = arith.constant 0 : i32
    %c0_i32_0 = arith.constant 0 : i32
    return %arg0, %c0_i32 : i32, i32
  }
  func.func @transform_1(%arg0: i32) -> (i32, i32) {
    %c0_i32 = arith.constant 0 : i32
    %c0_i32_0 = arith.constant 0 : i32
    return %arg0, %c0_i32 : i32, i32
  }
  func.func @transform_2(%arg0: i32) -> (i32, i32) {
    %c0_i32 = arith.constant 0 : i32
    %c0_i32_0 = arith.constant 0 : i32
    %c0_i32_1 = arith.constant 0 : i32
    return %c0_i32, %c0_i32_0 : i32, i32
  }
  func.func @transform_3(%arg0: i32) -> (i32, i32) {
    %c0_i32 = arith.constant 0 : i32
    %c0_i32_0 = arith.constant 0 : i32
    return %arg0, %c0_i32 : i32, i32
  }
  func.func @transform_4(%arg0: i32) -> (i32, i32) {
    %c0_i32 = arith.constant 0 : i32
    %c0_i32_0 = arith.constant 0 : i32
    return %arg0, %c0_i32 : i32, i32
  }
}

</mosaic_0001>

<llo_original>
// kernel: har_loss.1
$region0: #{har_loss.1}
  #allocation0 [shape = 'u32[]', space=smem, size = 0x4, offset = 0x4, fixed_abs, tag = 'smem constant byte address 0x4 - core index']
  #allocation1 [shape = 'u32[72,128]{1,0:T(1,128)}', space=vmem, size = 0x9000, scoped, tag = 'internal scratch']
  %s0 = inlined_call_operand.vmem [shape: f32[40,128], index: 0, kind: input, shape index: {}]
  %s1 = inlined_call_operand.vmem [shape: f32[40,128], index: 1, kind: input, shape index: {}]
  %s2 = inlined_call_operand.vmem [shape: f32[128,128], index: 2, kind: input, shape index: {}]
  %s3 = inlined_call_operand.vmem [shape: f32[24,128], index: 3, kind: output, shape index: {0}]
  %s4 = inlined_call_operand.vmem [shape: f32[24,128], index: 4, kind: output, shape index: {1}]
  %5 = xla_tuple %s3, %s4
  %s6 = sld [smem:[#allocation0]]
  $region53: #{har_loss.1} parent=0
    _
  %s8 = ssub.s32 1, %s6
  %s9 = scalar_select 0, %s8, %s6
  loop: start=0, step=1, limit=5
  $region2: #{har_loss.1} parent=0 // loop_pre_header
    _
  $region3: #{har_loss.1} parent=0 // loop_header
    %s11 = sphi 0, %s15
    %p12 = scmp.ge.s32.totalorder %s11, 5
    %s21 = sphi 0, %s23
    %s24 = sphi 0, %s21
    %s25 = sphi 0, %s24
    %s41 = sphi 0, %s25
    %s47 = sphi 0, %s49
    %s50 = sphi 0, %s47
    %s51 = sphi 0, %s50
    %s67 = sphi 0, %s51
    %s71 = sphi 0, %s71
    %s73 = sphi 0, %s71
    %s74 = sphi 0, %s73
    %s88 = sphi 0, %s74
    %s94 = sphi 0, %s96
    %s97 = sphi 0, %s94
    %s98 = sphi 0, %s97
    %s114 = sphi 0, %s98
    %s120 = sphi 0, %s122
    %s123 = sphi 0, %s120
    %s124 = sphi 0, %s123
    %s140 = sphi 0, %s124
  $region4: #{har_loss.1} parent=0 // loop_header_branch
    %14 = sbr.rel (%p12) target = $region8
  $region5: #{har_loss.1} parent=0 // loop_body
    %s16 = ssub.s32 %s11, 1
    %s17 = ssub.s32 %s11, 2
    %s18 = sadd.s32 %s11, 1
    %s19 = ssub.s32 %s11, %s18
    %p20 = scmp.eq.s32.totalorder %s19, 0
    %s22 = sadd.s32 %s21, 1
    %s23 = scalar_select %p20, %s21, %s22
    %p26 = pneg %p20
    %p27 = scmp.eq.s32.totalorder %s11, 2
    %p28 = por %p26, %p27
    %p29 = scmp.ne.s32.totalorder %s21, %s24
    %p30 = scmp.eq.s32.totalorder %s11, 0
    %p31 = por %p29, %p30
    %p32 = scmp.ne.s32.totalorder %s21, %s24
    %p33 = scmp.eq.s32.totalorder %s16, 2
    %p34 = por %p32, %p33
    %p35 = scmp.ne.s32.totalorder %s24, %s25
    %p36 = scmp.eq.s32.totalorder %s16, 0
    %p37 = por %p35, %p36
    %p38 = scmp.ne.s32.totalorder %s24, %s25
    %p39 = scmp.eq.s32.totalorder %s17, 2
    %p40 = por %p38, %p39
    %p42 = scmp.ne.s32.totalorder %s25, %s41
    %p43 = scmp.eq.s32.totalorder %s17, 0
    %p44 = por %p42, %p43
    %s45 = ssub.s32 %s11, %s18
    %p46 = scmp.eq.s32.totalorder %s45, 0
    %s48 = sadd.s32 %s47, 1
    %s49 = scalar_select %p46, %s47, %s48
    %p52 = pneg %p46
    %p53 = scmp.eq.s32.totalorder %s11, 2
    %p54 = por %p52, %p53
    %p55 = scmp.ne.s32.totalorder %s47, %s50
    %p56 = scmp.eq.s32.totalorder %s11, 0
    %p57 = por %p55, %p56
    %p58 = scmp.ne.s32.totalorder %s47, %s50
    %p59 = scmp.eq.s32.totalorder %s16, 2
    %p60 = por %p58, %p59
    %p61 = scmp.ne.s32.totalorder %s50, %s51
    %p62 = scmp.eq.s32.totalorder %s16, 0
    %p63 = por %p61, %p62
    %p64 = scmp.ne.s32.totalorder %s50, %s51
    %p65 = scmp.eq.s32.totalorder %s17, 2
    %p66 = por %p64, %p65
    %p68 = scmp.ne.s32.totalorder %s51, %s67
    %p69 = scmp.eq.s32.totalorder %s17, 0
    %p70 = por %p68, %p69
    %s72 = sadd.s32 %s71, 1
    %p75 = scmp.eq.s32.totalorder %s11, 2
    %p76 = scmp.ne.s32.totalorder %s71, %s73
    %p77 = scmp.eq.s32.totalorder %s11, 0
    %p78 = por %p76, %p77
    %p79 = scmp.ne.s32.totalorder %s71, %s73
    %p80 = scmp.eq.s32.totalorder %s16, 2
    %p81 = por %p79, %p80
    %p82 = scmp.ne.s32.totalorder %s73, %s74
    %p83 = scmp.eq.s32.totalorder %s16, 0
    %p84 = por %p82, %p83
    %p85 = scmp.ne.s32.totalorder %s73, %s74
    %p86 = scmp.eq.s32.totalorder %s17, 2
    %p87 = por %p85, %p86
    %p89 = scmp.ne.s32.totalorder %s74, %s88
    %p90 = scmp.eq.s32.totalorder %s17, 0
    %p91 = por %p89, %p90
    %s92 = ssub.s32 %s11, %s18
    %p93 = scmp.eq.s32.totalorder %s92, 0
    %s95 = sadd.s32 %s94, 1
    %s96 = scalar_select %p93, %s94, %s95
    %p99 = pneg %p93
    %p100 = scmp.eq.s32.totalorder %s11, 2
    %p101 = por %p99, %p100
    %p102 = scmp.ne.s32.totalorder %s94, %s97
    %p103 = scmp.eq.s32.totalorder %s11, 0
    %p104 = por %p102, %p103
    %p105 = scmp.ne.s32.totalorder %s94, %s97
    %p106 = scmp.eq.s32.totalorder %s16, 2
    %p107 = por %p105, %p106
    %p108 = scmp.ne.s32.totalorder %s97, %s98
    %p109 = scmp.eq.s32.totalorder %s16, 0
    %p110 = por %p108, %p109
    %p111 = scmp.ne.s32.totalorder %s97, %s98
    %p112 = scmp.eq.s32.totalorder %s17, 2
    %p113 = por %p111, %p112
    %p115 = scmp.ne.s32.totalorder %s98, %s114
    %p116 = scmp.eq.s32.totalorder %s17, 0
    %p117 = por %p115, %p116
    %s118 = ssub.s32 %s11, %s18
    %p119 = scmp.eq.s32.totalorder %s118, 0
    %s121 = sadd.s32 %s120, 1
    %s122 = scalar_select %p119, %s120, %s121
    %p125 = pneg %p119
    %p126 = scmp.eq.s32.totalorder %s11, 2
    %p127 = por %p125, %p126
    %p128 = scmp.ne.s32.totalorder %s120, %s123
    %p129 = scmp.eq.s32.totalorder %s11, 0
    %p130 = por %p128, %p129
    %p131 = scmp.ne.s32.totalorder %s120, %s123
    %p132 = scmp.eq.s32.totalorder %s16, 2
    %p133 = por %p131, %p132
    %p134 = scmp.ne.s32.totalorder %s123, %s124
    %p135 = scmp.eq.s32.totalorder %s16, 0
    %p136 = por %p134, %p135
    %p137 = scmp.ne.s32.totalorder %s123, %s124
    %p138 = scmp.eq.s32.totalorder %s17, 2
    %p139 = por %p137, %p138
    %p141 = scmp.ne.s32.totalorder %s124, %s140
    %p142 = scmp.eq.s32.totalorder %s17, 0
    %p143 = por %p141, %p142
    %p144 = scmp.le.s32.totalorder 1, %s11
    %p145 = scmp.lt.s32.totalorder %s11, 4
    %p146 = pnand %p144, %p145
    %p147 = pneg %p146
    // Predicated region
    $region9: #{har_loss.1} parent=5 // pred_check
      _
    $region10: #{har_loss.1} parent=5 // pred_check_branch
      %149 = sbr.rel (%p146) target = $region12
    $region11: #{har_loss.1} parent=5 // pred_region
      %s150 = ssub.s32 %s11, 1
      // Predicated region
      $region13: #{har_loss.1} parent=11 // pred_check
        %p151 = pneg %p84
      $region14: #{har_loss.1} parent=11 // pred_check_branch
        %153 = sbr.rel (%p151) target = $region16
      $region15: #{har_loss.1} parent=11 // pred_region
        _
      $region16: #{har_loss.1} parent=11 // pred_fallthru
        _
    $region12: #{har_loss.1} parent=5 // pred_fallthru
      _
    %p154 = scmp.lt.s32.totalorder %s11, 3
    // Predicated region
    $region17: #{har_loss.1} parent=5 // pred_check
      %p155 = pneg %p154
    $region18: #{har_loss.1} parent=5 // pred_check_branch
      %157 = sbr.rel (%p155) target = $region20
    $region19: #{har_loss.1} parent=5 // pred_region
      // Predicated region
      $region21: #{har_loss.1} parent=19 // pred_check
        %p158 = pneg %p31
      $region22: #{har_loss.1} parent=19 // pred_check_branch
        %160 = sbr.rel (%p158) target = $region24
      $region23: #{har_loss.1} parent=19 // pred_region
        %s161 = smul.u32 2, %s11
        %s162 = ssub.s32 5, %s161
        %p163 = scmp.lt.s32.totalorder %s162, 2
        %s164 = scalar_select %p163, %s162, 2
        %s165 = smul.u32 8, %s164
        %p166 = scmp.lt.s32.totalorder %s161, 4
        %s167 = scalar_select %p166, %s161, 4
        %s168 = smul.addr %s167, 8
        %s169 = scalar_lea.vmem %s0, %s168
        %s170 = smul.u32 2, %s11
        %s171 = ssub.s32 5, %s170
        %p172 = scmp.lt.s32.totalorder %s171, 2
        %s173 = scalar_select %p172, %s171, 2
        %s174 = smul.u32 8, %s173
      $region24: #{har_loss.1} parent=19 // pred_fallthru
        _
      // Predicated region
      $region25: #{har_loss.1} parent=19 // pred_check
        %p175 = pneg %p57
      $region26: #{har_loss.1} parent=19 // pred_check_branch
        %177 = sbr.rel (%p175) target = $region28
      $region27: #{har_loss.1} parent=19 // pred_region
        %s178 = smul.u32 2, %s11
        %s179 = ssub.s32 5, %s178
        %p180 = scmp.lt.s32.totalorder %s179, 2
        %s181 = scalar_select %p180, %s179, 2
        %s182 = smul.u32 8, %s181
        %p183 = scmp.lt.s32.totalorder %s178, 4
        %s184 = scalar_select %p183, %s178, 4
        %s185 = smul.addr %s184, 8
        %s186 = scalar_lea.vmem %s1, %s185
        %s187 = smul.u32 2, %s11
        %s188 = ssub.s32 5, %s187
        %p189 = scmp.lt.s32.totalorder %s188, 2
        %s190 = scalar_select %p189, %s188, 2
        %s191 = smul.u32 8, %s190
      $region28: #{har_loss.1} parent=19 // pred_fallthru
        _
    $region20: #{har_loss.1} parent=5 // pred_fallthru
      _
    %p192 = scmp.le.s32.totalorder 1, %s11
    %p193 = scmp.lt.s32.totalorder %s11, 4
    %p194 = pnand %p192, %p193
    %p195 = pneg %p194
    // Predicated region
    $region29: #{har_loss.1} parent=5 // pred_check
      _
    $region30: #{har_loss.1} parent=5 // pred_check_branch
      %197 = sbr.rel (%p194) target = $region32
    $region31: #{har_loss.1} parent=5 // pred_region
      %s198 = ssub.s32 %s11, 1
      %s199 = smul.u32 2, %s16
      %s200 = ssub.s32 5, %s199
      %p201 = scmp.lt.s32.totalorder %s200, 2
      %s202 = scalar_select %p201, %s200, 2
      %s203 = smul.u32 8, %s202
      %p204 = scmp.lt.s32.totalorder %s199, 4
      %s205 = scalar_select %p204, %s199, 4
      %s206 = smul.addr %s205, 8
      %s207 = scalar_lea.vmem %s0, %s206
      %p208 = pneg %p37
      %p209 = pneg %p34
      %s210 = smul.u32 2, %s16
      %s211 = ssub.s32 5, %s210
      %p212 = scmp.lt.s32.totalorder %s211, 2
      %s213 = scalar_select %p212, %s211, 2
      %s214 = smul.u32 8, %s213
      %p215 = scmp.lt.s32.totalorder %s210, 4
      %s216 = scalar_select %p215, %s210, 4
      %s217 = smul.addr %s216, 8
      %s218 = scalar_lea.vmem %s1, %s217
      %p219 = pneg %p63
      %p220 = pneg %p60
      %p221 = pneg %p84
      %p222 = pneg %p81
      %p223 = pneg %p110
      %p224 = pneg %p107
      %p225 = scmp.lt.s32.totalorder %s16, 2
      %s226 = scalar_select %p225, %s16, 2
      %s227 = smul.addr %s226, 8
      %s228 = scalar_lea.vmem %s3, %s227
      %p229 = pneg %p136
      %p230 = pneg %p133
      %p231 = scmp.lt.s32.totalorder %s16, 2
      %s232 = scalar_select %p231, %s16, 2
      %s233 = smul.addr %s232, 8
      %s234 = scalar_lea.vmem %s4, %s233
      %s235 = smul.u32 2, %s16
      %s236 = ssub.s32 5, %s235
      %p237 = scmp.lt.s32.totalorder %s236, 2
      %s238 = scalar_select %p237, %s236, 2
      %s239 = smul.u32 8, %s238
      %p240 = scmp.lt.s32.totalorder %s235, 4
      %s241 = scalar_select %p240, %s235, 4
      %s242 = smul.addr %s241, 8
      %s243 = scalar_lea.vmem %s0, %s242
      %s244 = smul.u32 2, %s16
      %s245 = ssub.s32 5, %s244
      %p246 = scmp.lt.s32.totalorder %s245, 2
      %s247 = scalar_select %p246, %s245, 2
      %s248 = smul.u32 8, %s247
      %s249 = smul.u32 2, %s16
      %s250 = ssub.s32 5, %s249
      %p251 = scmp.lt.s32.totalorder %s250, 2
      %s252 = scalar_select %p251, %s250, 2
      %s253 = smul.u32 8, %s252
      %p254 = scmp.lt.s32.totalorder %s249, 4
      %s255 = scalar_select %p254, %s249, 4
      %s256 = smul.addr %s255, 8
      %s257 = scalar_lea.vmem %s1, %s256
      %s258 = smul.u32 2, %s16
      %s259 = ssub.s32 5, %s258
      %p260 = scmp.lt.s32.totalorder %s259, 2
      %s261 = scalar_select %p260, %s259, 2
      %s262 = smul.u32 8, %s261
      %p263 = scmp.lt.s32.totalorder %s16, 2
      %s264 = scalar_select %p263, %s16, 2
      %s265 = smul.addr %s264, 8
      %s266 = scalar_lea.vmem %s3, %s265
      %p267 = scmp.lt.s32.totalorder %s16, 2
      %s268 = scalar_select %p267, %s16, 2
      %s269 = smul.addr %s268, 8
      %s270 = scalar_lea.vmem %s4, %s269
      %v271 = vld [vmem:[%s243] sm:$0xff]
      %v272 = vld [vmem:[%s243 + $0x8] sm:$0xff]
      %v273 = vld [vmem:[%s257] sm:$0xff]
      %v274 = vld [vmem:[%s257 + $0x8] sm:$0xff]
      %v275 = vlaneseq
      %v276 = vshrl.u32 %v275, 7
      %v277 = vadd.s32 %v276, 8
      %s278 = smul.u32 %s16, 16
      %v279 = vstv %s278
      %v280 = vadd.s32 %v276, %v279
      %v281 = vadd.s32 %v277, %v279
      %vm282 = vcmp.lt.s32.totalorder %v280, 40
      %vm283 = vcmp.lt.s32.totalorder %v281, 40
      %v284 = vsel %vm282, 1, 0
      %v285 = vsel %vm283, 1, 0
      %vm286 = vcmp.eq.s32.totalorder %v284, 1
      %vm287 = vcmp.eq.s32.totalorder %v285, 1
      %v288 = vsel %vm286, %v271, 0.0
      %v289 = vsel %vm287, %v272, 0.0
      %v290 = vsel %vm286, %v273, 0.0
      %v291 = vsel %vm287, %v274, 0.0
      %292 = vmax.xlane.f32.xlu0 %v288
      %v293 = vpop.xlane.xlu0 %292
      %294 = vmax.xlane.f32.xlu0 %v289
      %v295 = vpop.xlane.xlu0 %294
      %v296 = vsub.f32 %v288, %v293
      %v297 = vsub.f32 %v289, %v295
      %v298 = vmul.f32 %v296, 1.442695
      %v299 = vpow.pop %v298
      %v300 = vmul.f32 %v297, 1.442695
      %v301 = vpow.pop %v300
      %302 = vadd.xlane.f32.xlu0 %v299
      %v303 = vpop.xlane.xlu0 %302
      %304 = vadd.xlane.f32.xlu0 %v301
      %v305 = vpop.xlane.xlu0 %304
      %v306 = vrcp.pop %v303
      %v307 = vmul.f32 %v303, %v306
      %v308 = vsub.f32 1.0, %v307
      %v309 = vmul.f32 %v306, %v308
      %v310 = vadd.f32 %v306, %v309
      %vm311 = vweird.f32 %v303
      %vm312 = vweird.f32 %v306
      %vm313 = vmor %vm311, %vm312
      %v314 = vsel %vm313, %v306, %v310
      %v315 = vand.u32 2147483647, %v303
      %vm316 = vcmp.eq.f32.partialorder %v315, 8.507059e+37
      %v317 = vand.u32 %v303, 2147483648
      %v318 = vor.u32 1.1754944e-38, %v317
      %v319 = vsel %vm316, %v318, %v314
      %v320 = vrcp.pop %v305
      %v321 = vmul.f32 %v305, %v320
      %v322 = vsub.f32 1.0, %v321
      %v323 = vmul.f32 %v320, %v322
      %v324 = vadd.f32 %v320, %v323
      %vm325 = vweird.f32 %v305
      %vm326 = vweird.f32 %v320
      %vm327 = vmor %vm325, %vm326
      %v328 = vsel %vm327, %v320, %v324
      %v329 = vand.u32 2147483647, %v305
      %vm330 = vcmp.eq.f32.partialorder %v329, 8.507059e+37
      %v331 = vand.u32 %v305, 2147483648
      %v332 = vor.u32 1.1754944e-38, %v331
      %v333 = vsel %vm330, %v332, %v328
      %v334 = vmul.f32 %v299, %v319
      %v335 = vmul.f32 %v301, %v333
      %336 = vmax.xlane.f32.xlu0 %v290
      %v337 = vpop.xlane.xlu0 %336
      %338 = vmax.xlane.f32.xlu0 %v291
      %v339 = vpop.xlane.xlu0 %338
      %v340 = vsub.f32 %v290, %v337
      %v341 = vsub.f32 %v291, %v339
      %v342 = vmul.f32 %v340, 1.442695
      %v343 = vpow.pop %v342
      %v344 = vmul.f32 %v341, 1.442695
      %v345 = vpow.pop %v344
      %346 = vadd.xlane.f32.xlu0 %v343
      %v347 = vpop.xlane.xlu0 %346
      %348 = vadd.xlane.f32.xlu0 %v345
      %v349 = vpop.xlane.xlu0 %348
      %v350 = vrcp.pop %v347
      %v351 = vmul.f32 %v347, %v350
      %v352 = vsub.f32 1.0, %v351
      %v353 = vmul.f32 %v350, %v352
      %v354 = vadd.f32 %v350, %v353
      %vm355 = vweird.f32 %v347
      %vm356 = vweird.f32 %v350
      %vm357 = vmor %vm355, %vm356
      %v358 = vsel %vm357, %v350, %v354
      %v359 = vand.u32 2147483647, %v347
      %vm360 = vcmp.eq.f32.partialorder %v359, 8.507059e+37
      %v361 = vand.u32 %v347, 2147483648
      %v362 = vor.u32 1.1754944e-38, %v361
      %v363 = vsel %vm360, %v362, %v358
      %v364 = vrcp.pop %v349
      %v365 = vmul.f32 %v349, %v364
      %v366 = vsub.f32 1.0, %v365
      %v367 = vmul.f32 %v364, %v366
      %v368 = vadd.f32 %v364, %v367
      %vm369 = vweird.f32 %v349
      %vm370 = vweird.f32 %v364
      %vm371 = vmor %vm369, %vm370
      %v372 = vsel %vm371, %v364, %v368
      %v373 = vand.u32 2147483647, %v349
      %vm374 = vcmp.eq.f32.partialorder %v373, 8.507059e+37
      %v375 = vand.u32 %v349, 2147483648
      %v376 = vor.u32 1.1754944e-38, %v375
      %v377 = vsel %vm374, %v376, %v372
      %v378 = vmul.f32 %v343, %v363
      %v379 = vmul.f32 %v345, %v377
      %380 = vadd.xlane.f32.xlu0 %v334
      %v381 = vpop.xlane.xlu0 %380
      %382 = vadd.xlane.f32.xlu0 %v335
      %v383 = vpop.xlane.xlu0 %382
      %v384 = vmul.f32 %v381, 0.0078125
      %v385 = vmul.f32 %v383, 0.0078125
      %v386 = vmul.f32 %v334, %v334
      %v387 = vmul.f32 %v335, %v335
      %388 = vadd.xlane.f32.xlu0 %v386
      %v389 = vpop.xlane.xlu0 %388
      %390 = vadd.xlane.f32.xlu0 %v387
      %v391 = vpop.xlane.xlu0 %390
      %v392 = vmul.f32 %v389, 0.0078125
      %v393 = vmul.f32 %v391, 0.0078125
      %v394 = vmul.f32 %v384, %v384
      %v395 = vmul.f32 %v385, %v385
      %v396 = vsub.f32 %v392, %v394
      %v397 = vsub.f32 %v393, %v395
      %v398 = vmax.f32 %v396, 0.0
      %v399 = vmax.f32 %v397, 0.0
      %v400 = vrsqrt.pop %v398
      %v401 = vmul.f32 %v400, %v398
      %v402 = vmul.f32 %v401, %v400
      %v403 = vmul.f32 0.5, %v402
      %v404 = vsub.f32 1.5, %v403
      %v405 = vmul.f32 %v400, %v404
      %v406 = vmul.f32 %v398, %v405
      %vm407 = vcmp.eq.f32.partialorder %v398, inf
      %v408 = vsel %vm407, %v398, %v406
      %vm409 = vcmp.eq.f32.partialorder %v398, 0.0
      %v410 = vand.u32 %v398, 2147483648
      %v411 = vsel %vm409, %v410, %v408
      %v412 = vrsqrt.pop %v399
      %v413 = vmul.f32 %v412, %v399
      %v414 = vmul.f32 %v413, %v412
      %v415 = vmul.f32 0.5, %v414
      %v416 = vsub.f32 1.5, %v415
      %v417 = vmul.f32 %v412, %v416
      %v418 = vmul.f32 %v399, %v417
      %vm419 = vcmp.eq.f32.partialorder %v399, inf
      %v420 = vsel %vm419, %v399, %v418
      %vm421 = vcmp.eq.f32.partialorder %v399, 0.0
      %v422 = vand.u32 %v399, 2147483648
      %v423 = vsel %vm421, %v422, %v420
      %424 = vadd.xlane.f32.xlu0 %v378
      %v425 = vpop.xlane.xlu0 %424
      %426 = vadd.xlane.f32.xlu0 %v379
      %v427 = vpop.xlane.xlu0 %426
      %v428 = vmul.f32 %v425, 0.0078125
      %v429 = vmul.f32 %v427, 0.0078125
      %v430 = vmul.f32 %v378, %v378
      %v431 = vmul.f32 %v379, %v379
      %432 = vadd.xlane.f32.xlu0 %v430
      %v433 = vpop.xlane.xlu0 %432
      %434 = vadd.xlane.f32.xlu0 %v431
      %v435 = vpop.xlane.xlu0 %434
      %v436 = vmul.f32 %v433, 0.0078125
      %v437 = vmul.f32 %v435, 0.0078125
      %v438 = vmul.f32 %v428, %v428
      %v439 = vmul.f32 %v429, %v429
      %v440 = vsub.f32 %v436, %v438
      %v441 = vsub.f32 %v437, %v439
      %v442 = vmax.f32 %v440, 0.0
      %v443 = vmax.f32 %v441, 0.0
      %v444 = vrsqrt.pop %v442
      %v445 = vmul.f32 %v444, %v442
      %v446 = vmul.f32 %v445, %v444
      %v447 = vmul.f32 0.5, %v446
      %v448 = vsub.f32 1.5, %v447
      %v449 = vmul.f32 %v444, %v448
      %v450 = vmul.f32 %v442, %v449
      %vm451 = vcmp.eq.f32.partialorder %v442, inf
      %v452 = vsel %vm451, %v442, %v450
      %vm453 = vcmp.eq.f32.partialorder %v442, 0.0
      %v454 = vand.u32 %v442, 2147483648
      %v455 = vsel %vm453, %v454, %v452
      %v456 = vrsqrt.pop %v443
      %v457 = vmul.f32 %v456, %v443
      %v458 = vmul.f32 %v457, %v456
      %v459 = vmul.f32 0.5, %v458
      %v460 = vsub.f32 1.5, %v459
      %v461 = vmul.f32 %v456, %v460
      %v462 = vmul.f32 %v443, %v461
      %vm463 = vcmp.eq.f32.partialorder %v443, inf
      %v464 = vsel %vm463, %v443, %v462
      %vm465 = vcmp.eq.f32.partialorder %v443, 0.0
      %v466 = vand.u32 %v443, 2147483648
      %v467 = vsel %vm465, %v466, %v464
      %v468 = vsub.f32 %v411, %v455
      %v469 = vsub.f32 %v423, %v467
      %v470 = vand.u32 2147483647, %v468
      %v471 = vand.u32 2147483647, %v469
      %v472 = vsub.f32 %v334, %v378
      %v473 = vsub.f32 %v335, %v379
      %v474 = vld [vmem:[%s2] sm:$0xff]
      %v475 = vld [vmem:[%s2 + $0x8] sm:$0xff]
      %v476 = vld [vmem:[%s2 + $0x10] sm:$0xff]
      %v477 = vld [vmem:[%s2 + $0x18] sm:$0xff]
      %v478 = vld [vmem:[%s2 + $0x20] sm:$0xff]
      %v479 = vld [vmem:[%s2 + $0x28] sm:$0xff]
      %v480 = vld [vmem:[%s2 + $0x30] sm:$0xff]
      %v481 = vld [vmem:[%s2 + $0x38] sm:$0xff]
      %v482 = vld [vmem:[%s2 + $0x40] sm:$0xff]
      %v483 = vld [vmem:[%s2 + $0x48] sm:$0xff]
      %v484 = vld [vmem:[%s2 + $0x50] sm:$0xff]
      %v485 = vld [vmem:[%s2 + $0x58] sm:$0xff]
      %v486 = vld [vmem:[%s2 + $0x60] sm:$0xff]
      %v487 = vld [vmem:[%s2 + $0x68] sm:$0xff]
      %v488 = vld [vmem:[%s2 + $0x70] sm:$0xff]
      %v489 = vld [vmem:[%s2 + $0x78] sm:$0xff]
      %490 = vmatpush.msra.mxu0 %v489
      %491 = vmatpush.msra.mxu0 %v488
      %492 = vmatpush.msra.mxu0 %v487
      %493 = vmatpush.msra.mxu0 %v486
      %494 = vmatpush.msra.mxu0 %v485
      %495 = vmatpush.msra.mxu0 %v484
      %496 = vmatpush.msra.mxu0 %v483
      %497 = vmatpush.msra.mxu0 %v482
      %498 = vmatpush.msra.mxu0 %v481
      %499 = vmatpush.msra.mxu0 %v480
      %500 = vmatpush.msra.mxu0 %v479
      %501 = vmatpush.msra.mxu0 %v478
      %502 = vmatpush.msra.mxu0 %v477
      %503 = vmatpush.msra.mxu0 %v476
      %504 = vmatpush.msra.mxu0 %v475
      %505 = vmatpush.msra.mxu0 %v474
      %506 = vmatmul.f32.gmra.mxu0 %v472
      %v507 = vpop.f32.mrf.mxu0
      %v508 = vadd.f32 0.0, %v507
      %509 = vmatmul.f32.gmra.mxu0 %v473
      %v510 = vpop.f32.mrf.mxu0
      %v511 = vadd.f32 0.0, %v510
      %512 = vdwg.mxu0
      %v513 = vand.u32 2147483647, %v508
      %v514 = vand.u32 2147483647, %v511
      %515 = vadd.xlane.f32.xlu0 %v513
      %v516 = vpop.xlane.xlu0 %515
      %517 = vadd.xlane.f32.xlu0 %v514
      %v518 = vpop.xlane.xlu0 %517
      %v519 = vadd.f32 %v470, %v471
      %v520 = vrot.slane %v519, 4
      %v521 = vadd.f32 %v519, %v520
      %v522 = vrot.slane %v521, 2
      %v523 = vadd.f32 %v521, %v522
      %v524 = vrot.slane %v523, 1
      %v525 = vadd.f32 %v523, %v524
      %v526 = vadd.f32 %v516, %v518
      %v527 = vrot.slane %v526, 4
      %v528 = vadd.f32 %v526, %v527
      %v529 = vrot.slane %v528, 2
      %v530 = vadd.f32 %v528, %v529
      %v531 = vrot.slane %v530, 1
      %v532 = vadd.f32 %v530, %v531
      %v533 = vlaneseq
      %v534 = vand.u32 %v533, 127
      %vm535 = vcmp.eq.s32.totalorder %v276, 0
      %vm536 = vcmp.eq.s32.totalorder %v534, 0
      %vm537 = vmand %vm535, %vm536
      %v538 = vsel %vm537, %v525, 0.0
      %539 = vst [vmem:[%s266] sm:$0xff] %v538
      %v540 = vsel %vm537, %v532, 0.0
      %541 = vst [vmem:[%s270] sm:$0xff] %v540
      %p542 = scmp.lt.s32.totalorder %s16, 2
      %s543 = scalar_select %p542, %s16, 2
      %s544 = smul.addr %s543, 8
      %s545 = scalar_lea.vmem %s3, %s544
      %p546 = scmp.lt.s32.totalorder %s16, 2
      %s547 = scalar_select %p546, %s16, 2
      %s548 = smul.addr %s547, 8
      %s549 = scalar_lea.vmem %s4, %s548
      // Predicated region
      $region33: #{har_loss.1} parent=31 // pred_check
        %p550 = pneg %p107
      $region34: #{har_loss.1} parent=31 // pred_check_branch
        %552 = sbr.rel (%p550) target = $region36
      $region35: #{har_loss.1} parent=31 // pred_region
        _
      $region36: #{har_loss.1} parent=31 // pred_fallthru
        _
      // Predicated region
      $region37: #{har_loss.1} parent=31 // pred_check
        %p553 = pneg %p133
      $region38: #{har_loss.1} parent=31 // pred_check_branch
        %555 = sbr.rel (%p553) target = $region40
      $region39: #{har_loss.1} parent=31 // pred_region
        _
      $region40: #{har_loss.1} parent=31 // pred_fallthru
        _
    $region32: #{har_loss.1} parent=5 // pred_fallthru
      _
    %p556 = scmp.le.s32.totalorder 2, %s11
    // Predicated region
    $region41: #{har_loss.1} parent=5 // pred_check
      %p557 = pneg %p556
    $region42: #{har_loss.1} parent=5 // pred_check_branch
      %559 = sbr.rel (%p557) target = $region44
    $region43: #{har_loss.1} parent=5 // pred_region
      %s560 = ssub.s32 %s11, 2
      // Predicated region
      $region45: #{har_loss.1} parent=43 // pred_check
        %p561 = pneg %p113
      $region46: #{har_loss.1} parent=43 // pred_check_branch
        %563 = sbr.rel (%p561) target = $region48
      $region47: #{har_loss.1} parent=43 // pred_region
        %p564 = scmp.lt.s32.totalorder %s17, 2
        %s565 = scalar_select %p564, %s17, 2
        %s566 = smul.addr %s565, 8
        %s567 = scalar_lea.vmem %s3, %s566
      $region48: #{har_loss.1} parent=43 // pred_fallthru
        _
      // Predicated region
      $region49: #{har_loss.1} parent=43 // pred_check
        %p568 = pneg %p139
      $region50: #{har_loss.1} parent=43 // pred_check_branch
        %570 = sbr.rel (%p568) target = $region52
      $region51: #{har_loss.1} parent=43 // pred_region
        %p571 = scmp.lt.s32.totalorder %s17, 2
        %s572 = scalar_select %p571, %s17, 2
        %s573 = smul.addr %s572, 8
        %s574 = scalar_lea.vmem %s4, %s573
      $region52: #{har_loss.1} parent=43 // pred_fallthru
        _
    $region44: #{har_loss.1} parent=5 // pred_fallthru
      _
  $region6: #{har_loss.1} parent=0 // loop_footer
    %s15 = sadd.s32 1, %s11
  $region7: #{har_loss.1} parent=0 // loop_footer_branch
    %10 = sbr.rel target = $region3
  $region8: #{har_loss.1} parent=0 // loop_exit
    _

</llo_original>
